<compile_context>
chip_gen: v5e
topology: v5e:2x2
jax: 0.10.0
libtpu: 0.0.40
codegen_flags: <defaults>
</compile_context>

<pallas_src>
import jax
import jax.numpy as jnp
from jax.experimental import pallas as pl
from jax.experimental.pallas import tpu as pltpu


def _pos_emb_kernel(ids_ref, pe_ref, emb_hbm, out_ref, row_buf, sem):
    # ids_ref : SMEM  [B*S]   int32   (scalar-prefetched token ids, flattened)
    # pe_ref  : VMEM  [Ts, D] f32     (positional-encoding tile for this step)
    # emb_hbm : HBM   [V, D]  f32     (embedding table, stays in HBM)
    # out_ref : VMEM  [1, Ts, D] f32
    # row_buf : VMEM  [Ts, D] f32     (gathered embedding rows)
    # sem     : DMA semaphores, shape [Ts]
    b = pl.program_id(0)              # batch index
    j = pl.program_id(1)              # sequence-tile index
    n_seq_tiles = pl.num_programs(1)
    seq_tile, _ = row_buf.shape
    vocab = emb_hbm.shape[0]

    # Flat offset of this tile's first token in the [B*S] id vector.
    base = b * (n_seq_tiles * seq_tile) + j * seq_tile

    # Issue one row-gather DMA per token (HBM -> VMEM); all DMAs are in flight
    # concurrently, then waited. Per-token cost = D-wide copy (no V*D MACs,
    # no O(B*S*V) one-hot intermediate).
    copies = []
    for t in range(seq_tile):                     # static unroll; seq_tile small
        idx = ids_ref[base + t]
        idx = jnp.clip(idx, 0, vocab - 1)         # guard OOB DMA (torch would raise)
        cp = pltpu.make_async_copy(
            emb_hbm.at[pl.ds(idx, 1), :],
            row_buf.at[pl.ds(t, 1), :],
            sem.at[t],
        )
        cp.start()
        copies.append(cp)
    for cp in copies:
        cp.wait()

    # Add sinusoidal PE and store. (With D < 128 the store is lane-masked;
    # moot once the real embedding dim is a multiple of 128.)
    out_ref[...] = (row_buf[...] + pe_ref[...]).reshape(out_ref.shape)
    # TODO(synk): training-mode dropout (Bernoulli mask + 1/(1-p) scaling) not
    # applied; this matches PyTorch eval() semantics where nn.Dropout is identity.


def _pick_seq_tile(seq_len, max_tile=128):
    """Largest tile (multiple of 8, <= max_tile) that divides seq_len."""
    if seq_len <= max_tile:
        return seq_len
    t = max_tile - (max_tile % 8)
    while t >= 8:
        if seq_len % t == 0:
            return t
        t -= 8
    return seq_len


def positional_embedding(ids, emb_table, pos_enc, *, seq_tile=None):
    """ids [B,S] int32, emb_table [V,D] f32, pos_enc [S,D] f32 -> [B,S,D] f32.

    sin_embedding=False in the original module is equivalent to passing an
    all-zero pos_enc.
    """
    B, S = ids.shape
    V, D = emb_table.shape
    assert pos_enc.shape == (S, D)

    ts = seq_tile if seq_tile is not None else _pick_seq_tile(S)
    assert S % ts == 0, "sequence tile must divide seq_length"

    grid_spec = pltpu.PrefetchScalarGridSpec(
        num_scalar_prefetch=1,                     # flat ids -> SMEM
        grid=(B, S // ts),
        in_specs=[
            pl.BlockSpec((ts, D), lambda b, j, ids_sm: (j, 0)),   # positional enc
            pl.BlockSpec(memory_space=pl.ANY),                    # table stays in HBM
        ],
        out_specs=pl.BlockSpec((1, ts, D), lambda b, j, ids_sm: (b, j, 0)),
        scratch_shapes=[
            pltpu.VMEM((ts, D), jnp.float32),      # gathered embedding rows
            pltpu.SemaphoreType.DMA((ts,)),        # one DMA sem per token in tile
        ],
    )

    return pl.pallas_call(
        _pos_emb_kernel,
        out_shape=jax.ShapeDtypeStruct((B, S, D), jnp.float32),
        grid_spec=grid_spec,
        compiler_params=pltpu.CompilerParams(
            dimension_semantics=("parallel", "parallel"),
        ),
    )(ids.reshape(-1).astype(jnp.int32), pos_enc, emb_table)


def make_sinusoidal_pe(seq_length, embedding_dim):
    # Matches the PyTorch buffer construction (requires even embedding_dim).
    position = jnp.arange(seq_length, dtype=jnp.float32)[:, None]            # [S,1]
    div = 10000.0 ** (
        jnp.arange(0, embedding_dim, 2, dtype=jnp.float32) / embedding_dim
    )                                                                        # [D/2]
    pe = jnp.zeros((seq_length, embedding_dim), dtype=jnp.float32)
    pe = pe.at[:, 0::2].set(jnp.sin(position / div))
    pe = pe.at[:, 1::2].set(jnp.cos(position / div))
    return pe


if __name__ == "__main__":
    # Small shapes consistent with the module's forward:
    # vocab V=32, embedding_dim D=32, seq_length S=8, batch B=2.
    B, S, V, D = 2, 8, 32, 32

    key = jax.random.PRNGKey(0)
    k_emb, k_ids = jax.random.split(key)

    emb_table = jax.random.normal(k_emb, (V, D), dtype=jnp.float32)  # ~N(0,1) init
    ids = jax.random.randint(k_ids, (B, S), 0, V, dtype=jnp.int32)
    pe = make_sinusoidal_pe(S, D)

    out = positional_embedding(ids, emb_table, pe)
    out = jax.block_until_ready(out)

    # Pure-JAX reference: embedding lookup + PE broadcast (dropout = identity).
    ref = emb_table[ids] + pe[None, :, :]
    assert out.shape == (B, S, D)
    assert out.dtype == jnp.float32
    assert jnp.allclose(out, ref, atol=1e-6), "mismatch vs reference"

    print("KERNEL_OK")
</pallas_src>

<mosaic_0001>
module attributes {stable_mosaic.version = 11 : i64} {
  func.func @_pos_emb_kernel(%arg0: i32, %arg1: i32, %arg2: memref<16xi32, #tpu.memory_space<smem>>, %arg3: memref<8x32xf32, #tpu.memory_space<vmem>>, %arg4: memref<32x32xf32, #tpu.memory_space<any>>, %arg5: memref<1x8x32xf32, #tpu.memory_space<vmem>>, %arg6: memref<8x32xf32, #tpu.memory_space<vmem>>, %arg7: memref<8x!tpu.dma_semaphore, #tpu.memory_space<semaphore_mem>>) attributes {dimension_semantics = [#tpu.dimension_semantics<parallel>, #tpu.dimension_semantics<parallel>], iteration_bounds = array<i64: 2, 1>, scalar_prefetch = 1 : i64, scratch_operands = 2 : i64, tpu.core_type = #tpu.core_type<tc>, window_params = [{transform_indices = @transform_0, window_bounds = array<i64: 8, 32>}, {}, {transform_indices = @transform_2, window_bounds = array<i64: 1, 8, 32>}]} {
    %c8_i32 = arith.constant 8 : i32
    %0 = arith.muli %arg0, %c8_i32 : i32
    %c8_i32_0 = arith.constant 8 : i32
    %1 = arith.muli %arg1, %c8_i32_0 : i32
    %2 = arith.addi %0, %1 : i32
    %c0_i32 = arith.constant 0 : i32
    %3 = arith.addi %2, %c0_i32 : i32
    %4 = arith.index_cast %3 : i32 to index
    %5 = memref.load %arg2[%4] : memref<16xi32, #tpu.memory_space<smem>>
    %c0_i32_1 = arith.constant 0 : i32
    %c31_i32 = arith.constant 31 : i32
    %6 = arith.maxsi %c0_i32_1, %5 : i32
    %7 = arith.minsi %c31_i32, %6 : i32
    %c0_i32_2 = arith.constant 0 : i32
    %c0_i32_3 = arith.constant 0 : i32
    %8 = tpu.memref_slice %arg4[%7, %c0_i32_3] : memref<32x32xf32, #tpu.memory_space<any>> -> memref<1x32xf32, #tpu.memory_space<any>>
    %c0_i32_4 = arith.constant 0 : i32
    %c0_i32_5 = arith.constant 0 : i32
    %9 = tpu.memref_slice %arg6[%c0_i32_4, %c0_i32_5] : memref<8x32xf32, #tpu.memory_space<vmem>> -> memref<1x32xf32, #tpu.memory_space<vmem>>
    %10 = tpu.memref_slice %arg7[%c0_i32_2] : memref<8x!tpu.dma_semaphore, #tpu.memory_space<semaphore_mem>> -> memref<1x!tpu.dma_semaphore, #tpu.memory_space<semaphore_mem>>
    %11 = tpu.memref_squeeze %10 : memref<1x!tpu.dma_semaphore, #tpu.memory_space<semaphore_mem>> -> memref<!tpu.dma_semaphore, #tpu.memory_space<semaphore_mem>>
    tpu.enqueue_dma source(%8 : memref<1x32xf32, #tpu.memory_space<any>>) target(%9 : memref<1x32xf32, #tpu.memory_space<vmem>>) target_semaphore(%11 : memref<!tpu.dma_semaphore, #tpu.memory_space<semaphore_mem>>)
    %c1_i32 = arith.constant 1 : i32
    %12 = arith.addi %2, %c1_i32 : i32
    %13 = arith.index_cast %12 : i32 to index
    %14 = memref.load %arg2[%13] : memref<16xi32, #tpu.memory_space<smem>>
    %c0_i32_6 = arith.constant 0 : i32
    %c31_i32_7 = arith.constant 31 : i32
    %15 = arith.maxsi %c0_i32_6, %14 : i32
    %16 = arith.minsi %c31_i32_7, %15 : i32
    %c1_i32_8 = arith.constant 1 : i32
    %c0_i32_9 = arith.constant 0 : i32
    %17 = tpu.memref_slice %arg4[%16, %c0_i32_9] : memref<32x32xf32, #tpu.memory_space<any>> -> memref<1x32xf32, #tpu.memory_space<any>>
    %c1_i32_10 = arith.constant 1 : i32
    %c0_i32_11 = arith.constant 0 : i32
    %18 = tpu.memref_slice %arg6[%c1_i32_10, %c0_i32_11] : memref<8x32xf32, #tpu.memory_space<vmem>> -> memref<1x32xf32, #tpu.memory_space<vmem>>
    %19 = tpu.memref_slice %arg7[%c1_i32_8] : memref<8x!tpu.dma_semaphore, #tpu.memory_space<semaphore_mem>> -> memref<1x!tpu.dma_semaphore, #tpu.memory_space<semaphore_mem>>
    %20 = tpu.memref_squeeze %19 : memref<1x!tpu.dma_semaphore, #tpu.memory_space<semaphore_mem>> -> memref<!tpu.dma_semaphore, #tpu.memory_space<semaphore_mem>>
    tpu.enqueue_dma source(%17 : memref<1x32xf32, #tpu.memory_space<any>>) target(%18 : memref<1x32xf32, #tpu.memory_space<vmem>>) target_semaphore(%20 : memref<!tpu.dma_semaphore, #tpu.memory_space<semaphore_mem>>)
    %c2_i32 = arith.constant 2 : i32
    %21 = arith.addi %2, %c2_i32 : i32
    %22 = arith.index_cast %21 : i32 to index
    %23 = memref.load %arg2[%22] : memref<16xi32, #tpu.memory_space<smem>>
    %c0_i32_12 = arith.constant 0 : i32
    %c31_i32_13 = arith.constant 31 : i32
    %24 = arith.maxsi %c0_i32_12, %23 : i32
    %25 = arith.minsi %c31_i32_13, %24 : i32
    %c2_i32_14 = arith.constant 2 : i32
    %c0_i32_15 = arith.constant 0 : i32
    %26 = tpu.memref_slice %arg4[%25, %c0_i32_15] : memref<32x32xf32, #tpu.memory_space<any>> -> memref<1x32xf32, #tpu.memory_space<any>>
    %c2_i32_16 = arith.constant 2 : i32
    %c0_i32_17 = arith.constant 0 : i32
    %27 = tpu.memref_slice %arg6[%c2_i32_16, %c0_i32_17] : memref<8x32xf32, #tpu.memory_space<vmem>> -> memref<1x32xf32, #tpu.memory_space<vmem>>
    %28 = tpu.memref_slice %arg7[%c2_i32_14] : memref<8x!tpu.dma_semaphore, #tpu.memory_space<semaphore_mem>> -> memref<1x!tpu.dma_semaphore, #tpu.memory_space<semaphore_mem>>
    %29 = tpu.memref_squeeze %28 : memref<1x!tpu.dma_semaphore, #tpu.memory_space<semaphore_mem>> -> memref<!tpu.dma_semaphore, #tpu.memory_space<semaphore_mem>>
    tpu.enqueue_dma source(%26 : memref<1x32xf32, #tpu.memory_space<any>>) target(%27 : memref<1x32xf32, #tpu.memory_space<vmem>>) target_semaphore(%29 : memref<!tpu.dma_semaphore, #tpu.memory_space<semaphore_mem>>)
    %c3_i32 = arith.constant 3 : i32
    %30 = arith.addi %2, %c3_i32 : i32
    %31 = arith.index_cast %30 : i32 to index
    %32 = memref.load %arg2[%31] : memref<16xi32, #tpu.memory_space<smem>>
    %c0_i32_18 = arith.constant 0 : i32
    %c31_i32_19 = arith.constant 31 : i32
    %33 = arith.maxsi %c0_i32_18, %32 : i32
    %34 = arith.minsi %c31_i32_19, %33 : i32
    %c3_i32_20 = arith.constant 3 : i32
    %c0_i32_21 = arith.constant 0 : i32
    %35 = tpu.memref_slice %arg4[%34, %c0_i32_21] : memref<32x32xf32, #tpu.memory_space<any>> -> memref<1x32xf32, #tpu.memory_space<any>>
    %c3_i32_22 = arith.constant 3 : i32
    %c0_i32_23 = arith.constant 0 : i32
    %36 = tpu.memref_slice %arg6[%c3_i32_22, %c0_i32_23] : memref<8x32xf32, #tpu.memory_space<vmem>> -> memref<1x32xf32, #tpu.memory_space<vmem>>
    %37 = tpu.memref_slice %arg7[%c3_i32_20] : memref<8x!tpu.dma_semaphore, #tpu.memory_space<semaphore_mem>> -> memref<1x!tpu.dma_semaphore, #tpu.memory_space<semaphore_mem>>
    %38 = tpu.memref_squeeze %37 : memref<1x!tpu.dma_semaphore, #tpu.memory_space<semaphore_mem>> -> memref<!tpu.dma_semaphore, #tpu.memory_space<semaphore_mem>>
    tpu.enqueue_dma source(%35 : memref<1x32xf32, #tpu.memory_space<any>>) target(%36 : memref<1x32xf32, #tpu.memory_space<vmem>>) target_semaphore(%38 : memref<!tpu.dma_semaphore, #tpu.memory_space<semaphore_mem>>)
    %c4_i32 = arith.constant 4 : i32
    %39 = arith.addi %2, %c4_i32 : i32
    %40 = arith.index_cast %39 : i32 to index
    %41 = memref.load %arg2[%40] : memref<16xi32, #tpu.memory_space<smem>>
    %c0_i32_24 = arith.constant 0 : i32
    %c31_i32_25 = arith.constant 31 : i32
    %42 = arith.maxsi %c0_i32_24, %41 : i32
    %43 = arith.minsi %c31_i32_25, %42 : i32
    %c4_i32_26 = arith.constant 4 : i32
    %c0_i32_27 = arith.constant 0 : i32
    %44 = tpu.memref_slice %arg4[%43, %c0_i32_27] : memref<32x32xf32, #tpu.memory_space<any>> -> memref<1x32xf32, #tpu.memory_space<any>>
    %c4_i32_28 = arith.constant 4 : i32
    %c0_i32_29 = arith.constant 0 : i32
    %45 = tpu.memref_slice %arg6[%c4_i32_28, %c0_i32_29] : memref<8x32xf32, #tpu.memory_space<vmem>> -> memref<1x32xf32, #tpu.memory_space<vmem>>
    %46 = tpu.memref_slice %arg7[%c4_i32_26] : memref<8x!tpu.dma_semaphore, #tpu.memory_space<semaphore_mem>> -> memref<1x!tpu.dma_semaphore, #tpu.memory_space<semaphore_mem>>
    %47 = tpu.memref_squeeze %46 : memref<1x!tpu.dma_semaphore, #tpu.memory_space<semaphore_mem>> -> memref<!tpu.dma_semaphore, #tpu.memory_space<semaphore_mem>>
    tpu.enqueue_dma source(%44 : memref<1x32xf32, #tpu.memory_space<any>>) target(%45 : memref<1x32xf32, #tpu.memory_space<vmem>>) target_semaphore(%47 : memref<!tpu.dma_semaphore, #tpu.memory_space<semaphore_mem>>)
    %c5_i32 = arith.constant 5 : i32
    %48 = arith.addi %2, %c5_i32 : i32
    %49 = arith.index_cast %48 : i32 to index
    %50 = memref.load %arg2[%49] : memref<16xi32, #tpu.memory_space<smem>>
    %c0_i32_30 = arith.constant 0 : i32
    %c31_i32_31 = arith.constant 31 : i32
    %51 = arith.maxsi %c0_i32_30, %50 : i32
    %52 = arith.minsi %c31_i32_31, %51 : i32
    %c5_i32_32 = arith.constant 5 : i32
    %c0_i32_33 = arith.constant 0 : i32
    %53 = tpu.memref_slice %arg4[%52, %c0_i32_33] : memref<32x32xf32, #tpu.memory_space<any>> -> memref<1x32xf32, #tpu.memory_space<any>>
    %c5_i32_34 = arith.constant 5 : i32
    %c0_i32_35 = arith.constant 0 : i32
    %54 = tpu.memref_slice %arg6[%c5_i32_34, %c0_i32_35] : memref<8x32xf32, #tpu.memory_space<vmem>> -> memref<1x32xf32, #tpu.memory_space<vmem>>
    %55 = tpu.memref_slice %arg7[%c5_i32_32] : memref<8x!tpu.dma_semaphore, #tpu.memory_space<semaphore_mem>> -> memref<1x!tpu.dma_semaphore, #tpu.memory_space<semaphore_mem>>
    %56 = tpu.memref_squeeze %55 : memref<1x!tpu.dma_semaphore, #tpu.memory_space<semaphore_mem>> -> memref<!tpu.dma_semaphore, #tpu.memory_space<semaphore_mem>>
    tpu.enqueue_dma source(%53 : memref<1x32xf32, #tpu.memory_space<any>>) target(%54 : memref<1x32xf32, #tpu.memory_space<vmem>>) target_semaphore(%56 : memref<!tpu.dma_semaphore, #tpu.memory_space<semaphore_mem>>)
    %c6_i32 = arith.constant 6 : i32
    %57 = arith.addi %2, %c6_i32 : i32
    %58 = arith.index_cast %57 : i32 to index
    %59 = memref.load %arg2[%58] : memref<16xi32, #tpu.memory_space<smem>>
    %c0_i32_36 = arith.constant 0 : i32
    %c31_i32_37 = arith.constant 31 : i32
    %60 = arith.maxsi %c0_i32_36, %59 : i32
    %61 = arith.minsi %c31_i32_37, %60 : i32
    %c6_i32_38 = arith.constant 6 : i32
    %c0_i32_39 = arith.constant 0 : i32
    %62 = tpu.memref_slice %arg4[%61, %c0_i32_39] : memref<32x32xf32, #tpu.memory_space<any>> -> memref<1x32xf32, #tpu.memory_space<any>>
    %c6_i32_40 = arith.constant 6 : i32
    %c0_i32_41 = arith.constant 0 : i32
    %63 = tpu.memref_slice %arg6[%c6_i32_40, %c0_i32_41] : memref<8x32xf32, #tpu.memory_space<vmem>> -> memref<1x32xf32, #tpu.memory_space<vmem>>
    %64 = tpu.memref_slice %arg7[%c6_i32_38] : memref<8x!tpu.dma_semaphore, #tpu.memory_space<semaphore_mem>> -> memref<1x!tpu.dma_semaphore, #tpu.memory_space<semaphore_mem>>
    %65 = tpu.memref_squeeze %64 : memref<1x!tpu.dma_semaphore, #tpu.memory_space<semaphore_mem>> -> memref<!tpu.dma_semaphore, #tpu.memory_space<semaphore_mem>>
    tpu.enqueue_dma source(%62 : memref<1x32xf32, #tpu.memory_space<any>>) target(%63 : memref<1x32xf32, #tpu.memory_space<vmem>>) target_semaphore(%65 : memref<!tpu.dma_semaphore, #tpu.memory_space<semaphore_mem>>)
    %c7_i32 = arith.constant 7 : i32
    %66 = arith.addi %2, %c7_i32 : i32
    %67 = arith.index_cast %66 : i32 to index
    %68 = memref.load %arg2[%67] : memref<16xi32, #tpu.memory_space<smem>>
    %c0_i32_42 = arith.constant 0 : i32
    %c31_i32_43 = arith.constant 31 : i32
    %69 = arith.maxsi %c0_i32_42, %68 : i32
    %70 = arith.minsi %c31_i32_43, %69 : i32
    %c7_i32_44 = arith.constant 7 : i32
    %c0_i32_45 = arith.constant 0 : i32
    %71 = tpu.memref_slice %arg4[%70, %c0_i32_45] : memref<32x32xf32, #tpu.memory_space<any>> -> memref<1x32xf32, #tpu.memory_space<any>>
    %c7_i32_46 = arith.constant 7 : i32
    %c0_i32_47 = arith.constant 0 : i32
    %72 = tpu.memref_slice %arg6[%c7_i32_46, %c0_i32_47] : memref<8x32xf32, #tpu.memory_space<vmem>> -> memref<1x32xf32, #tpu.memory_space<vmem>>
    %73 = tpu.memref_slice %arg7[%c7_i32_44] : memref<8x!tpu.dma_semaphore, #tpu.memory_space<semaphore_mem>> -> memref<1x!tpu.dma_semaphore, #tpu.memory_space<semaphore_mem>>
    %74 = tpu.memref_squeeze %73 : memref<1x!tpu.dma_semaphore, #tpu.memory_space<semaphore_mem>> -> memref<!tpu.dma_semaphore, #tpu.memory_space<semaphore_mem>>
    tpu.enqueue_dma source(%71 : memref<1x32xf32, #tpu.memory_space<any>>) target(%72 : memref<1x32xf32, #tpu.memory_space<vmem>>) target_semaphore(%74 : memref<!tpu.dma_semaphore, #tpu.memory_space<semaphore_mem>>)
    %c0_i32_48 = arith.constant 0 : i32
    %c0_i32_49 = arith.constant 0 : i32
    %75 = tpu.memref_slice %arg4[%7, %c0_i32_49] : memref<32x32xf32, #tpu.memory_space<any>> -> memref<1x32xf32, #tpu.memory_space<any>>
    %c0_i32_50 = arith.constant 0 : i32
    %c0_i32_51 = arith.constant 0 : i32
    %76 = tpu.memref_slice %arg6[%c0_i32_50, %c0_i32_51] : memref<8x32xf32, #tpu.memory_space<vmem>> -> memref<1x32xf32, #tpu.memory_space<vmem>>
    %77 = tpu.memref_slice %arg7[%c0_i32_48] : memref<8x!tpu.dma_semaphore, #tpu.memory_space<semaphore_mem>> -> memref<1x!tpu.dma_semaphore, #tpu.memory_space<semaphore_mem>>
    %78 = tpu.memref_squeeze %77 : memref<1x!tpu.dma_semaphore, #tpu.memory_space<semaphore_mem>> -> memref<!tpu.dma_semaphore, #tpu.memory_space<semaphore_mem>>
    tpu.wait_dma2 semaphore(%78 : memref<!tpu.dma_semaphore, #tpu.memory_space<semaphore_mem>>) src(%75 : memref<1x32xf32, #tpu.memory_space<any>>) dst(%76 : memref<1x32xf32, #tpu.memory_space<vmem>>)
    %c1_i32_52 = arith.constant 1 : i32
    %c0_i32_53 = arith.constant 0 : i32
    %79 = tpu.memref_slice %arg4[%16, %c0_i32_53] : memref<32x32xf32, #tpu.memory_space<any>> -> memref<1x32xf32, #tpu.memory_space<any>>
    %c1_i32_54 = arith.constant 1 : i32
    %c0_i32_55 = arith.constant 0 : i32
    %80 = tpu.memref_slice %arg6[%c1_i32_54, %c0_i32_55] : memref<8x32xf32, #tpu.memory_space<vmem>> -> memref<1x32xf32, #tpu.memory_space<vmem>>
    %81 = tpu.memref_slice %arg7[%c1_i32_52] : memref<8x!tpu.dma_semaphore, #tpu.memory_space<semaphore_mem>> -> memref<1x!tpu.dma_semaphore, #tpu.memory_space<semaphore_mem>>
    %82 = tpu.memref_squeeze %81 : memref<1x!tpu.dma_semaphore, #tpu.memory_space<semaphore_mem>> -> memref<!tpu.dma_semaphore, #tpu.memory_space<semaphore_mem>>
    tpu.wait_dma2 semaphore(%82 : memref<!tpu.dma_semaphore, #tpu.memory_space<semaphore_mem>>) src(%79 : memref<1x32xf32, #tpu.memory_space<any>>) dst(%80 : memref<1x32xf32, #tpu.memory_space<vmem>>)
    %c2_i32_56 = arith.constant 2 : i32
    %c0_i32_57 = arith.constant 0 : i32
    %83 = tpu.memref_slice %arg4[%25, %c0_i32_57] : memref<32x32xf32, #tpu.memory_space<any>> -> memref<1x32xf32, #tpu.memory_space<any>>
    %c2_i32_58 = arith.constant 2 : i32
    %c0_i32_59 = arith.constant 0 : i32
    %84 = tpu.memref_slice %arg6[%c2_i32_58, %c0_i32_59] : memref<8x32xf32, #tpu.memory_space<vmem>> -> memref<1x32xf32, #tpu.memory_space<vmem>>
    %85 = tpu.memref_slice %arg7[%c2_i32_56] : memref<8x!tpu.dma_semaphore, #tpu.memory_space<semaphore_mem>> -> memref<1x!tpu.dma_semaphore, #tpu.memory_space<semaphore_mem>>
    %86 = tpu.memref_squeeze %85 : memref<1x!tpu.dma_semaphore, #tpu.memory_space<semaphore_mem>> -> memref<!tpu.dma_semaphore, #tpu.memory_space<semaphore_mem>>
    tpu.wait_dma2 semaphore(%86 : memref<!tpu.dma_semaphore, #tpu.memory_space<semaphore_mem>>) src(%83 : memref<1x32xf32, #tpu.memory_space<any>>) dst(%84 : memref<1x32xf32, #tpu.memory_space<vmem>>)
    %c3_i32_60 = arith.constant 3 : i32
    %c0_i32_61 = arith.constant 0 : i32
    %87 = tpu.memref_slice %arg4[%34, %c0_i32_61] : memref<32x32xf32, #tpu.memory_space<any>> -> memref<1x32xf32, #tpu.memory_space<any>>
    %c3_i32_62 = arith.constant 3 : i32
    %c0_i32_63 = arith.constant 0 : i32
    %88 = tpu.memref_slice %arg6[%c3_i32_62, %c0_i32_63] : memref<8x32xf32, #tpu.memory_space<vmem>> -> memref<1x32xf32, #tpu.memory_space<vmem>>
    %89 = tpu.memref_slice %arg7[%c3_i32_60] : memref<8x!tpu.dma_semaphore, #tpu.memory_space<semaphore_mem>> -> memref<1x!tpu.dma_semaphore, #tpu.memory_space<semaphore_mem>>
    %90 = tpu.memref_squeeze %89 : memref<1x!tpu.dma_semaphore, #tpu.memory_space<semaphore_mem>> -> memref<!tpu.dma_semaphore, #tpu.memory_space<semaphore_mem>>
    tpu.wait_dma2 semaphore(%90 : memref<!tpu.dma_semaphore, #tpu.memory_space<semaphore_mem>>) src(%87 : memref<1x32xf32, #tpu.memory_space<any>>) dst(%88 : memref<1x32xf32, #tpu.memory_space<vmem>>)
    %c4_i32_64 = arith.constant 4 : i32
    %c0_i32_65 = arith.constant 0 : i32
    %91 = tpu.memref_slice %arg4[%43, %c0_i32_65] : memref<32x32xf32, #tpu.memory_space<any>> -> memref<1x32xf32, #tpu.memory_space<any>>
    %c4_i32_66 = arith.constant 4 : i32
    %c0_i32_67 = arith.constant 0 : i32
    %92 = tpu.memref_slice %arg6[%c4_i32_66, %c0_i32_67] : memref<8x32xf32, #tpu.memory_space<vmem>> -> memref<1x32xf32, #tpu.memory_space<vmem>>
    %93 = tpu.memref_slice %arg7[%c4_i32_64] : memref<8x!tpu.dma_semaphore, #tpu.memory_space<semaphore_mem>> -> memref<1x!tpu.dma_semaphore, #tpu.memory_space<semaphore_mem>>
    %94 = tpu.memref_squeeze %93 : memref<1x!tpu.dma_semaphore, #tpu.memory_space<semaphore_mem>> -> memref<!tpu.dma_semaphore, #tpu.memory_space<semaphore_mem>>
    tpu.wait_dma2 semaphore(%94 : memref<!tpu.dma_semaphore, #tpu.memory_space<semaphore_mem>>) src(%91 : memref<1x32xf32, #tpu.memory_space<any>>) dst(%92 : memref<1x32xf32, #tpu.memory_space<vmem>>)
    %c5_i32_68 = arith.constant 5 : i32
    %c0_i32_69 = arith.constant 0 : i32
    %95 = tpu.memref_slice %arg4[%52, %c0_i32_69] : memref<32x32xf32, #tpu.memory_space<any>> -> memref<1x32xf32, #tpu.memory_space<any>>
    %c5_i32_70 = arith.constant 5 : i32
    %c0_i32_71 = arith.constant 0 : i32
    %96 = tpu.memref_slice %arg6[%c5_i32_70, %c0_i32_71] : memref<8x32xf32, #tpu.memory_space<vmem>> -> memref<1x32xf32, #tpu.memory_space<vmem>>
    %97 = tpu.memref_slice %arg7[%c5_i32_68] : memref<8x!tpu.dma_semaphore, #tpu.memory_space<semaphore_mem>> -> memref<1x!tpu.dma_semaphore, #tpu.memory_space<semaphore_mem>>
    %98 = tpu.memref_squeeze %97 : memref<1x!tpu.dma_semaphore, #tpu.memory_space<semaphore_mem>> -> memref<!tpu.dma_semaphore, #tpu.memory_space<semaphore_mem>>
    tpu.wait_dma2 semaphore(%98 : memref<!tpu.dma_semaphore, #tpu.memory_space<semaphore_mem>>) src(%95 : memref<1x32xf32, #tpu.memory_space<any>>) dst(%96 : memref<1x32xf32, #tpu.memory_space<vmem>>)
    %c6_i32_72 = arith.constant 6 : i32
    %c0_i32_73 = arith.constant 0 : i32
    %99 = tpu.memref_slice %arg4[%61, %c0_i32_73] : memref<32x32xf32, #tpu.memory_space<any>> -> memref<1x32xf32, #tpu.memory_space<any>>
    %c6_i32_74 = arith.constant 6 : i32
    %c0_i32_75 = arith.constant 0 : i32
    %100 = tpu.memref_slice %arg6[%c6_i32_74, %c0_i32_75] : memref<8x32xf32, #tpu.memory_space<vmem>> -> memref<1x32xf32, #tpu.memory_space<vmem>>
    %101 = tpu.memref_slice %arg7[%c6_i32_72] : memref<8x!tpu.dma_semaphore, #tpu.memory_space<semaphore_mem>> -> memref<1x!tpu.dma_semaphore, #tpu.memory_space<semaphore_mem>>
    %102 = tpu.memref_squeeze %101 : memref<1x!tpu.dma_semaphore, #tpu.memory_space<semaphore_mem>> -> memref<!tpu.dma_semaphore, #tpu.memory_space<semaphore_mem>>
    tpu.wait_dma2 semaphore(%102 : memref<!tpu.dma_semaphore, #tpu.memory_space<semaphore_mem>>) src(%99 : memref<1x32xf32, #tpu.memory_space<any>>) dst(%100 : memref<1x32xf32, #tpu.memory_space<vmem>>)
    %c7_i32_76 = arith.constant 7 : i32
    %c0_i32_77 = arith.constant 0 : i32
    %103 = tpu.memref_slice %arg4[%70, %c0_i32_77] : memref<32x32xf32, #tpu.memory_space<any>> -> memref<1x32xf32, #tpu.memory_space<any>>
    %c7_i32_78 = arith.constant 7 : i32
    %c0_i32_79 = arith.constant 0 : i32
    %104 = tpu.memref_slice %arg6[%c7_i32_78, %c0_i32_79] : memref<8x32xf32, #tpu.memory_space<vmem>> -> memref<1x32xf32, #tpu.memory_space<vmem>>
    %105 = tpu.memref_slice %arg7[%c7_i32_76] : memref<8x!tpu.dma_semaphore, #tpu.memory_space<semaphore_mem>> -> memref<1x!tpu.dma_semaphore, #tpu.memory_space<semaphore_mem>>
    %106 = tpu.memref_squeeze %105 : memref<1x!tpu.dma_semaphore, #tpu.memory_space<semaphore_mem>> -> memref<!tpu.dma_semaphore, #tpu.memory_space<semaphore_mem>>
    tpu.wait_dma2 semaphore(%106 : memref<!tpu.dma_semaphore, #tpu.memory_space<semaphore_mem>>) src(%103 : memref<1x32xf32, #tpu.memory_space<any>>) dst(%104 : memref<1x32xf32, #tpu.memory_space<vmem>>)
    %c0 = arith.constant 0 : index
    %c0_80 = arith.constant 0 : index
    %107 = vector.load %arg6[%c0, %c0_80] : memref<8x32xf32, #tpu.memory_space<vmem>>, vector<8x32xf32>
    %c0_81 = arith.constant 0 : index
    %c0_82 = arith.constant 0 : index
    %108 = vector.load %arg3[%c0_81, %c0_82] : memref<8x32xf32, #tpu.memory_space<vmem>>, vector<8x32xf32>
    %109 = arith.addf %107, %108 : vector<8x32xf32>
    %110 = vector.shape_cast %109 : vector<8x32xf32> to vector<1x8x32xf32>
    %c0_83 = arith.constant 0 : index
    %c0_84 = arith.constant 0 : index
    %c0_85 = arith.constant 0 : index
    %111 = vector.load %arg5[%c0_83, %c0_84, %c0_85] : memref<1x8x32xf32, #tpu.memory_space<vmem>>, vector<1x8x32xf32>
    tpu.vector_store %arg5[%c0_83, %c0_84, %c0_85], %110 {strides = array<i32>} : memref<1x8x32xf32, #tpu.memory_space<vmem>>, vector<1x8x32xf32>,
    return
  }
  func.func @transform_0(%arg0: i32, %arg1: i32, %arg2: memref<16xi32, #tpu.memory_space<smem>>) -> (i32, i32) {
    %c0_i32 = arith.constant 0 : i32
    %c0_i32_0 = arith.constant 0 : i32
    return %arg1, %c0_i32 : i32, i32
  }
  func.func @transform_2(%arg0: i32, %arg1: i32, %arg2: memref<16xi32, #tpu.memory_space<smem>>) -> (i32, i32, i32) {
    %c0_i32 = arith.constant 0 : i32
    %c0_i32_0 = arith.constant 0 : i32
    return %arg0, %arg1, %c0_i32 : i32, i32, i32
  }
}

</mosaic_0001>

<llo_original>
// kernel: tpu_custom_call.1
$region0: #{tpu_custom_call.1}
  #allocation0 [shape = 'u32[]', space=smem, size = 0x4, offset = 0x4, fixed_abs, tag = 'smem constant byte address 0x4 - core index']
  #allocation1 [shape = 'u32[72,128]{1,0:T(1,128)}', space=vmem, size = 0x9000, scoped, tag = 'internal scratch']
  #allocation2 [shape = 'f32[8,32]{1,0:T(8,128)}', space=vmem, size = 0x1000, scoped, tag = 'scratch operand']
  #allocation3 [shape = 's32[8]{0}', space=sflag, size = 0x20, scoped, tag = 'scratch operand']
  #allocation4 [shape = 's32[1]{0}', space=sflag, size = 0x4, scoped, tag = 'scoped memory for tpu_custom_call.1']
  #allocation5 [shape = 'u8[512]{0}', space=smem, size = 0x200, scoped, tag = 'prefetched SMEM operand 0']
  #allocation10 [shape = 's32[]', space=sflag, size = 0x4, offset = 0, fixed_abs, tag = 'sflag constant byte address 0x0 - dummy sync flag']
  #allocation11 [shape = 's32[]', space=sflag, size = 0x4, offset = 0, fixed_abs, tag = 'sflag constant byte address 0x0 - dummy sync flag']
  #allocation12 [shape = 'u32[]', space=smem, size = 0x4, offset = 0x44, fixed_abs, tag = 'smem constant byte address 0x44 - assertion arg 0']
  #allocation13 [shape = 'u32[]', space=smem, size = 0x4, offset = 0x48, fixed_abs, tag = 'smem constant byte address 0x48 - assertion arg 1']
  #allocation14 [shape = 's32[]', space=sflag, size = 0x4, offset = 0, fixed_abs, tag = 'sflag constant byte address 0x0 - dummy sync flag']
  #allocation15 [shape = 's32[]', space=sflag, size = 0x4, offset = 0, fixed_abs, tag = 'sflag constant byte address 0x0 - dummy sync flag']
  #allocation16 [shape = 's32[]', space=sflag, size = 0x4, offset = 0, fixed_abs, tag = 'sflag constant byte address 0x0 - dummy sync flag']
  #allocation17 [shape = 's32[]', space=sflag, size = 0x4, offset = 0, fixed_abs, tag = 'sflag constant byte address 0x0 - dummy sync flag']
  #allocation18 [shape = 's32[]', space=sflag, size = 0x4, offset = 0, fixed_abs, tag = 'sflag constant byte address 0x0 - dummy sync flag']
  #allocation19 [shape = 's32[]', space=sflag, size = 0x4, offset = 0, fixed_abs, tag = 'sflag constant byte address 0x0 - dummy sync flag']
  #allocation20 [shape = 's32[]', space=sflag, size = 0x4, offset = 0, fixed_abs, tag = 'sflag constant byte address 0x0 - dummy sync flag']
  #allocation21 [shape = 's32[]', space=sflag, size = 0x4, offset = 0, fixed_abs, tag = 'sflag constant byte address 0x0 - dummy sync flag']
  #allocation22 [shape = 's32[]', space=sflag, size = 0x4, offset = 0, fixed_abs, tag = 'sflag constant byte address 0x0 - dummy sync flag']
  #allocation23 [shape = 's32[]', space=sflag, size = 0x4, offset = 0, fixed_abs, tag = 'sflag constant byte address 0x0 - dummy sync flag']
  #allocation24 [shape = 's32[]', space=sflag, size = 0x4, offset = 0, fixed_abs, tag = 'sflag constant byte address 0x0 - dummy sync flag']
  #allocation25 [shape = 's32[]', space=sflag, size = 0x4, offset = 0, fixed_abs, tag = 'sflag constant byte address 0x0 - dummy sync flag']
  #allocation26 [shape = 's32[]', space=sflag, size = 0x4, offset = 0, fixed_abs, tag = 'sflag constant byte address 0x0 - dummy sync flag']
  #allocation27 [shape = 's32[]', space=sflag, size = 0x4, offset = 0, fixed_abs, tag = 'sflag constant byte address 0x0 - dummy sync flag']
  %s0 = inlined_call_operand.hbm [shape: s32[16], index: 0, kind: input, shape index: {}]
  %s1 = inlined_call_operand.hbm [shape: f32[8,32], index: 1, kind: input, shape index: {}]
  %s2 = inlined_call_operand.hbm [shape: f32[32,32], index: 2, kind: input, shape index: {}]
  %s3 = inlined_call_operand.hbm [shape: f32[2,8,32], index: 3, kind: output, shape index: {}]
  %s4 = sld [smem:[#allocation0]]
  $region73: #{tpu_custom_call.1} parent=0
    _
  %s6 = ssub.s32 1, %s4
  %s7 = scalar_select 0, %s6, %s4
  %s9 = sshll.u32 %s0, 4
  %s10 = int_to_ptr.hbm [resolvable:$true] %s9
  %12 = dma.hbm_to_smem %s10, 16, [#allocation5], [#allocation4]
  %14 = dma.done [#allocation4], 16
  %15 = sfence
  $region1: #{tpu_custom_call.1} parent=0
    #allocation6 [shape = 'u8[4096]{0}', space=vmem, size = 0x1000, scoped, tag = 'input window, operand 1, single buffered']
    #allocation7 [shape = 's32[2]{0}', space=sflag, size = 0x8, scoped, tag = 'scoped memory for tpu_custom_call.1']
    #allocation8 [shape = 's32[2]{0}', space=sflag, size = 0x8, scoped, tag = 'scoped memory for tpu_custom_call.1']
    #allocation9 [shape = 'u8[8192]{0}', space=vmem, size = 0x2000, scoped, tag = 'output window, operand 0']
    %16 = vsyncpa [#allocation7], 0
    %17 = vsyncpa [#allocation8], 0
    %s18 = scalar_lea.sflag [#allocation8], 1
    %19 = vsyncpa %s18, 0
    loop: start=0, step=1, limit=4
    $region2: #{tpu_custom_call.1} parent=1 // loop_pre_header
      _
    $region3: #{tpu_custom_call.1} parent=1 // loop_header
      %s21 = sphi 0, %s25
      %p22 = scmp.ge.s32.totalorder %s21, 4
      %s28 = sphi 0, %s40
      %s29 = sphi 0, %s36
      %s30 = sphi 0, %s28
      %s31 = sphi 0, %s29
      %s32 = sphi 0, %s30
      %s33 = sphi 0, %s31
      %s43 = sphi 0, %s45
      %s46 = sphi 0, %s43
      %s47 = sphi 0, %s46
      %s63 = sphi 0, %s47
      %s71 = sphi 0, %s73
      %s74 = sphi 0, %s71
      %s75 = sphi 0, %s74
      %s91 = sphi 0, %s75
    $region4: #{tpu_custom_call.1} parent=1 // loop_header_branch
      %24 = sbr.rel (%p22) target = $region8
    $region5: #{tpu_custom_call.1} parent=1 // loop_body
      %s26 = ssub.s32 %s21, 1
      %s27 = ssub.s32 %s21, 2
      %s34 = sadd.s32 1, %s29
      %p35 = scmp.ge.s32.totalorder %s34, 1
      %s36 = scalar_select %p35, 0, %s34
      %s37 = sadd.s32 1, %s28
      %s38 = scalar_select %p35, %s37, %s28
      %p39 = scmp.ge.s32.totalorder %s38, 2
      %s40 = scalar_select %p39, 0, %s38
      %s41 = ssub.s32 %s29, %s36
      %p42 = scmp.eq.s32.totalorder %s41, 0
      %s44 = sadd.s32 %s43, 1
      %s45 = scalar_select %p42, %s43, %s44
      %p48 = pneg %p42
      %p49 = scmp.eq.s32.totalorder %s21, 1
      %p50 = por %p48, %p49
      %p51 = scmp.ne.s32.totalorder %s43, %s46
      %p52 = scmp.eq.s32.totalorder %s21, 0
      %p53 = por %p51, %p52
      %p54 = scmp.ne.s32.totalorder %s43, %s46
      %p55 = scmp.eq.s32.totalorder %s26, 1
      %p56 = por %p54, %p55
      %p57 = scmp.ne.s32.totalorder %s46, %s47
      %p58 = scmp.eq.s32.totalorder %s26, 0
      %p59 = por %p57, %p58
      %p60 = scmp.ne.s32.totalorder %s46, %s47
      %p61 = scmp.eq.s32.totalorder %s27, 1
      %p62 = por %p60, %p61
      %p64 = scmp.ne.s32.totalorder %s47, %s63
      %p65 = scmp.eq.s32.totalorder %s27, 0
      %p66 = por %p64, %p65
      %s67 = ssub.s32 %s28, %s40
      %s68 = ssub.s32 %s29, %s36
      %s69 = sor.u32 %s67, %s68
      %p70 = scmp.eq.s32.totalorder %s69, 0
      %s72 = sadd.s32 %s71, 1
      %s73 = scalar_select %p70, %s71, %s72
      %p76 = pneg %p70
      %p77 = scmp.eq.s32.totalorder %s21, 1
      %p78 = por %p76, %p77
      %p79 = scmp.ne.s32.totalorder %s71, %s74
      %p80 = scmp.eq.s32.totalorder %s21, 0
      %p81 = por %p79, %p80
      %p82 = scmp.ne.s32.totalorder %s71, %s74
      %p83 = scmp.eq.s32.totalorder %s26, 1
      %p84 = por %p82, %p83
      %p85 = scmp.ne.s32.totalorder %s74, %s75
      %p86 = scmp.eq.s32.totalorder %s26, 0
      %p87 = por %p85, %p86
      %p88 = scmp.ne.s32.totalorder %s74, %s75
      %p89 = scmp.eq.s32.totalorder %s27, 1
      %p90 = por %p88, %p89
      %p92 = scmp.ne.s32.totalorder %s75, %s91
      %p93 = scmp.eq.s32.totalorder %s27, 0
      %p94 = por %p92, %p93
      %p95 = scmp.le.s32.totalorder 1, %s21
      %p96 = scmp.lt.s32.totalorder %s21, 3
      %p97 = pnand %p95, %p96
      %p98 = pneg %p97
      // Predicated region
      $region9: #{tpu_custom_call.1} parent=5 // pred_check
        _
      $region10: #{tpu_custom_call.1} parent=5 // pred_check_branch
        %100 = sbr.rel (%p97) target = $region12
      $region11: #{tpu_custom_call.1} parent=5 // pred_region
        %s101 = ssub.s32 %s21, 1
        // Predicated region
        $region13: #{tpu_custom_call.1} parent=11 // pred_check
          %p102 = pneg %p59
        $region14: #{tpu_custom_call.1} parent=11 // pred_check_branch
          %104 = sbr.rel (%p102) target = $region16
        $region15: #{tpu_custom_call.1} parent=11 // pred_region
          %106 = vsyncadd [#allocation7], 0
          %s107 = smul.addr %s31, 8
          %s108 = scalar_lea.hbm %s1, %s107
          %s110 = sshll.u32 %s108, 4
          %s111 = int_to_ptr.hbm [resolvable:$true] %s110
          %s112 = sshll.u32 [#allocation6], 4
          %s113 = int_to_ptr.vmem [resolvable:$true] %s112
          %115 = dma.hbm_to_vmem [thread:$0]  %s111, 128, %s113, [#allocation7]
        $region16: #{tpu_custom_call.1} parent=11 // pred_fallthru
          _
      $region12: #{tpu_custom_call.1} parent=5 // pred_fallthru
        _
      %p116 = scmp.lt.s32.totalorder %s21, 2
      // Predicated region
      $region17: #{tpu_custom_call.1} parent=5 // pred_check
        %p117 = pneg %p116
      $region18: #{tpu_custom_call.1} parent=5 // pred_check_branch
        %119 = sbr.rel (%p117) target = $region20
      $region19: #{tpu_custom_call.1} parent=5 // pred_region
        _
      $region20: #{tpu_custom_call.1} parent=5 // pred_fallthru
        _
      %p120 = scmp.le.s32.totalorder 1, %s21
      %p121 = scmp.lt.s32.totalorder %s21, 3
      %p122 = pnand %p120, %p121
      %p123 = pneg %p122
      // Predicated region
      $region21: #{tpu_custom_call.1} parent=5 // pred_check
        _
      $region22: #{tpu_custom_call.1} parent=5 // pred_check_branch
        %125 = sbr.rel (%p122) target = $region24
      $region23: #{tpu_custom_call.1} parent=5 // pred_region
        %s126 = ssub.s32 %s21, 1
        // Predicated region
        $region25: #{tpu_custom_call.1} parent=23 // pred_check
          %p127 = pneg %p59
        $region26: #{tpu_custom_call.1} parent=23 // pred_check_branch
          %129 = sbr.rel (%p127) target = $region28
        $region27: #{tpu_custom_call.1} parent=23 // pred_region
          %131 = dma.done [#allocation7], 128
        $region28: #{tpu_custom_call.1} parent=23 // pred_fallthru
          _
        %p132 = pneg %p59
        %p133 = pneg %p56
        %p134 = pneg %p87
        %p135 = pneg %p84
        %s136 = sand.u32 %s74, 1
        %s137 = scalar_lea.sflag [#allocation8], %s136
        %s138 = sand.u32 %s74, 1
        %s139 = smul.addr %s138, 8
        %s140 = scalar_lea.vmem [#allocation9], %s139
        %s141 = smul.u32 %s30, 8
        %s142 = smul.u32 %s31, 8
        %s143 = sadd.s32 %s141, %s142
        %s144 = sld [smem:[#allocation5 + %s143]]
        %p145 = scmp.gt.s32.totalorder %s144, 0
        %s146 = scalar_select %p145, %s144, 0
        %p147 = scmp.lt.s32.totalorder %s146, 31
        %s148 = scalar_select %p147, %s146, 31
        %s149 = scalar_lea.hbm %s2, %s148
        // Predicated region
        $region29: #{tpu_custom_call.1} parent=23 // pred_check
          _
        $region30: #{tpu_custom_call.1} parent=23 // pred_check_branch
          %151 = sbr.rel target = $region32
        $region31: #{tpu_custom_call.1} parent=23 // pred_region
          %152 = sst [smem:[#allocation12]] [#allocation11]
          %153 = sst [smem:[#allocation13]] [#allocation10]
        $region32: #{tpu_custom_call.1} parent=23 // pred_fallthru
          _
        %155 = shalt.err (0)
        %s157 = sshll.u32 %s149, 4
        %s158 = int_to_ptr.hbm [resolvable:$true] %s157
        %s159 = sshll.u32 [#allocation2], 4
        %s160 = int_to_ptr.vmem [resolvable:$true] %s159
        %162 = dma.hbm_to_vmem [thread:$0]  %s158, 16, %s160, [#allocation3]
        %s163 = sadd.s32 %s143, 1
        %s164 = sld [smem:[#allocation5 + %s163]]
        %p165 = scmp.gt.s32.totalorder %s164, 0
        %s166 = scalar_select %p165, %s164, 0
        %p167 = scmp.lt.s32.totalorder %s166, 31
        %s168 = scalar_select %p167, %s166, 31
        %s169 = scalar_lea.hbm %s2, %s168
        %s170 = scalar_lea.vmem [#allocation2], 1
        %s171 = scalar_lea.sflag [#allocation3], 1
        // Predicated region
        $region33: #{tpu_custom_call.1} parent=23 // pred_check
          _
        $region34: #{tpu_custom_call.1} parent=23 // pred_check_branch
          %173 = sbr.rel target = $region36
        $region35: #{tpu_custom_call.1} parent=23 // pred_region
          %174 = sst [smem:[#allocation12]] [#allocation15]
          %175 = sst [smem:[#allocation13]] [#allocation14]
        $region36: #{tpu_custom_call.1} parent=23 // pred_fallthru
          _
        %177 = shalt.err (0)
        %s179 = sshll.u32 %s169, 4
        %s180 = int_to_ptr.hbm [resolvable:$true] %s179
        %s181 = sshll.u32 %s170, 4
        %s182 = int_to_ptr.vmem [resolvable:$true] %s181
        %184 = dma.hbm_to_vmem [thread:$0]  %s180, 16, %s182, %s171
        %s185 = sadd.s32 %s143, 2
        %s186 = sld [smem:[#allocation5 + %s185]]
        %p187 = scmp.gt.s32.totalorder %s186, 0
        %s188 = scalar_select %p187, %s186, 0
        %p189 = scmp.lt.s32.totalorder %s188, 31
        %s190 = scalar_select %p189, %s188, 31
        %s191 = scalar_lea.hbm %s2, %s190
        %s192 = scalar_lea.vmem [#allocation2], 2
        %s193 = scalar_lea.sflag [#allocation3], 2
        // Predicated region
        $region37: #{tpu_custom_call.1} parent=23 // pred_check
          _
        $region38: #{tpu_custom_call.1} parent=23 // pred_check_branch
          %195 = sbr.rel target = $region40
        $region39: #{tpu_custom_call.1} parent=23 // pred_region
          %196 = sst [smem:[#allocation12]] [#allocation17]
          %197 = sst [smem:[#allocation13]] [#allocation16]
        $region40: #{tpu_custom_call.1} parent=23 // pred_fallthru
          _
        %199 = shalt.err (0)
        %s201 = sshll.u32 %s191, 4
        %s202 = int_to_ptr.hbm [resolvable:$true] %s201
        %s203 = sshll.u32 %s192, 4
        %s204 = int_to_ptr.vmem [resolvable:$true] %s203
        %206 = dma.hbm_to_vmem [thread:$0]  %s202, 16, %s204, %s193
        %s207 = sadd.s32 %s143, 3
        %s208 = sld [smem:[#allocation5 + %s207]]
        %p209 = scmp.gt.s32.totalorder %s208, 0
        %s210 = scalar_select %p209, %s208, 0
        %p211 = scmp.lt.s32.totalorder %s210, 31
        %s212 = scalar_select %p211, %s210, 31
        %s213 = scalar_lea.hbm %s2, %s212
        %s214 = scalar_lea.vmem [#allocation2], 3
        %s215 = scalar_lea.sflag [#allocation3], 3
        // Predicated region
        $region41: #{tpu_custom_call.1} parent=23 // pred_check
          _
        $region42: #{tpu_custom_call.1} parent=23 // pred_check_branch
          %217 = sbr.rel target = $region44
        $region43: #{tpu_custom_call.1} parent=23 // pred_region
          %218 = sst [smem:[#allocation12]] [#allocation19]
          %219 = sst [smem:[#allocation13]] [#allocation18]
        $region44: #{tpu_custom_call.1} parent=23 // pred_fallthru
          _
        %221 = shalt.err (0)
        %s223 = sshll.u32 %s213, 4
        %s224 = int_to_ptr.hbm [resolvable:$true] %s223
        %s225 = sshll.u32 %s214, 4
        %s226 = int_to_ptr.vmem [resolvable:$true] %s225
        %228 = dma.hbm_to_vmem [thread:$0]  %s224, 16, %s226, %s215
        %s229 = sadd.s32 %s143, 4
        %s230 = sld [smem:[#allocation5 + %s229]]
        %p231 = scmp.gt.s32.totalorder %s230, 0
        %s232 = scalar_select %p231, %s230, 0
        %p233 = scmp.lt.s32.totalorder %s232, 31
        %s234 = scalar_select %p233, %s232, 31
        %s235 = scalar_lea.hbm %s2, %s234
        %s236 = scalar_lea.vmem [#allocation2], 4
        %s237 = scalar_lea.sflag [#allocation3], 4
        // Predicated region
        $region45: #{tpu_custom_call.1} parent=23 // pred_check
          _
        $region46: #{tpu_custom_call.1} parent=23 // pred_check_branch
          %239 = sbr.rel target = $region48
        $region47: #{tpu_custom_call.1} parent=23 // pred_region
          %240 = sst [smem:[#allocation12]] [#allocation21]
          %241 = sst [smem:[#allocation13]] [#allocation20]
        $region48: #{tpu_custom_call.1} parent=23 // pred_fallthru
          _
        %243 = shalt.err (0)
        %s245 = sshll.u32 %s235, 4
        %s246 = int_to_ptr.hbm [resolvable:$true] %s245
        %s247 = sshll.u32 %s236, 4
        %s248 = int_to_ptr.vmem [resolvable:$true] %s247
        %250 = dma.hbm_to_vmem [thread:$0]  %s246, 16, %s248, %s237
        %s251 = sadd.s32 %s143, 5
        %s252 = sld [smem:[#allocation5 + %s251]]
        %p253 = scmp.gt.s32.totalorder %s252, 0
        %s254 = scalar_select %p253, %s252, 0
        %p255 = scmp.lt.s32.totalorder %s254, 31
        %s256 = scalar_select %p255, %s254, 31
        %s257 = scalar_lea.hbm %s2, %s256
        %s258 = scalar_lea.vmem [#allocation2], 5
        %s259 = scalar_lea.sflag [#allocation3], 5
        // Predicated region
        $region49: #{tpu_custom_call.1} parent=23 // pred_check
          _
        $region50: #{tpu_custom_call.1} parent=23 // pred_check_branch
          %261 = sbr.rel target = $region52
        $region51: #{tpu_custom_call.1} parent=23 // pred_region
          %262 = sst [smem:[#allocation12]] [#allocation23]
          %263 = sst [smem:[#allocation13]] [#allocation22]
        $region52: #{tpu_custom_call.1} parent=23 // pred_fallthru
          _
        %265 = shalt.err (0)
        %s267 = sshll.u32 %s257, 4
        %s268 = int_to_ptr.hbm [resolvable:$true] %s267
        %s269 = sshll.u32 %s258, 4
        %s270 = int_to_ptr.vmem [resolvable:$true] %s269
        %272 = dma.hbm_to_vmem [thread:$0]  %s268, 16, %s270, %s259
        %s273 = sadd.s32 %s143, 6
        %s274 = sld [smem:[#allocation5 + %s273]]
        %p275 = scmp.gt.s32.totalorder %s274, 0
        %s276 = scalar_select %p275, %s274, 0
        %p277 = scmp.lt.s32.totalorder %s276, 31
        %s278 = scalar_select %p277, %s276, 31
        %s279 = scalar_lea.hbm %s2, %s278
        %s280 = scalar_lea.vmem [#allocation2], 6
        %s281 = scalar_lea.sflag [#allocation3], 6
        // Predicated region
        $region53: #{tpu_custom_call.1} parent=23 // pred_check
          _
        $region54: #{tpu_custom_call.1} parent=23 // pred_check_branch
          %283 = sbr.rel target = $region56
        $region55: #{tpu_custom_call.1} parent=23 // pred_region
          %284 = sst [smem:[#allocation12]] [#allocation25]
          %285 = sst [smem:[#allocation13]] [#allocation24]
        $region56: #{tpu_custom_call.1} parent=23 // pred_fallthru
          _
        %287 = shalt.err (0)
        %s289 = sshll.u32 %s279, 4
        %s290 = int_to_ptr.hbm [resolvable:$true] %s289
        %s291 = sshll.u32 %s280, 4
        %s292 = int_to_ptr.vmem [resolvable:$true] %s291
        %294 = dma.hbm_to_vmem [thread:$0]  %s290, 16, %s292, %s281
        %s295 = sadd.s32 %s143, 7
        %s296 = sld [smem:[#allocation5 + %s295]]
        %p297 = scmp.gt.s32.totalorder %s296, 0
        %s298 = scalar_select %p297, %s296, 0
        %p299 = scmp.lt.s32.totalorder %s298, 31
        %s300 = scalar_select %p299, %s298, 31
        %s301 = scalar_lea.hbm %s2, %s300
        %s302 = scalar_lea.vmem [#allocation2], 7
        %s303 = scalar_lea.sflag [#allocation3], 7
        // Predicated region
        $region57: #{tpu_custom_call.1} parent=23 // pred_check
          _
        $region58: #{tpu_custom_call.1} parent=23 // pred_check_branch
          %305 = sbr.rel target = $region60
        $region59: #{tpu_custom_call.1} parent=23 // pred_region
          %306 = sst [smem:[#allocation12]] [#allocation27]
          %307 = sst [smem:[#allocation13]] [#allocation26]
        $region60: #{tpu_custom_call.1} parent=23 // pred_fallthru
          _
        %309 = shalt.err (0)
        %s311 = sshll.u32 %s301, 4
        %s312 = int_to_ptr.hbm [resolvable:$true] %s311
        %s313 = sshll.u32 %s302, 4
        %s314 = int_to_ptr.vmem [resolvable:$true] %s313
        %316 = dma.hbm_to_vmem [thread:$0]  %s312, 16, %s314, %s303
        %s317 = smul.u32 1, 1
        %s318 = sshll.u32 %s317, 4
        %319 = dma.done [#allocation3], %s318
        %s320 = sshll.u32 %s317, 4
        %321 = dma.done %s171, %s320
        %s322 = sshll.u32 %s317, 4
        %323 = dma.done %s193, %s322
        %s324 = sshll.u32 %s317, 4
        %325 = dma.done %s215, %s324
        %s326 = sshll.u32 %s317, 4
        %327 = dma.done %s237, %s326
        %s328 = sshll.u32 %s317, 4
        %329 = dma.done %s259, %s328
        %s330 = sshll.u32 %s317, 4
        %331 = dma.done %s281, %s330
        %s332 = sshll.u32 %s317, 4
        %333 = dma.done %s303, %s332
        %v334 = vld [vmem:[#allocation2] sm:$0xff]
        %v335 = vld [vmem:[#allocation6] sm:$0xff]
        %v336 = vadd.f32 %v334, %v335
        %vm337 = vcmask 261120
        %338 = vst.msk [vmem:[%s140] sm:$0xff] %vm337, %v336
        %s339 = sand.u32 %s74, 1
        %s340 = scalar_lea.sflag [#allocation8], %s339
        %s341 = sand.u32 %s74, 1
        %s342 = smul.addr %s341, 8
        %s343 = scalar_lea.vmem [#allocation9], %s342
        // Predicated region
        $region61: #{tpu_custom_call.1} parent=23 // pred_check
          %p344 = pneg %p84
        $region62: #{tpu_custom_call.1} parent=23 // pred_check_branch
          %346 = sbr.rel (%p344) target = $region64
        $region63: #{tpu_custom_call.1} parent=23 // pred_region
          %348 = vsyncadd %s340, 0
          %s349 = sadd.s32 %s31, %s30
          %s350 = smul.addr %s349, 8
          %s351 = scalar_lea.hbm %s3, %s350
          %s353 = sshll.u32 %s343, 4
          %s354 = int_to_ptr.vmem [resolvable:$true] %s353
          %s355 = sshll.u32 %s351, 4
          %s356 = int_to_ptr.hbm [resolvable:$true] %s355
          %358 = dma.vmem_to_hbm [thread:$0]  %s354, 128, %s356, %s340
        $region64: #{tpu_custom_call.1} parent=23 // pred_fallthru
          _
      $region24: #{tpu_custom_call.1} parent=5 // pred_fallthru
        _
      %p359 = scmp.le.s32.totalorder 2, %s21
      // Predicated region
      $region65: #{tpu_custom_call.1} parent=5 // pred_check
        %p360 = pneg %p359
      $region66: #{tpu_custom_call.1} parent=5 // pred_check_branch
        %362 = sbr.rel (%p360) target = $region68
      $region67: #{tpu_custom_call.1} parent=5 // pred_region
        %s363 = ssub.s32 %s21, 2
        // Predicated region
        $region69: #{tpu_custom_call.1} parent=67 // pred_check
          %p364 = pneg %p90
        $region70: #{tpu_custom_call.1} parent=67 // pred_check_branch
          %366 = sbr.rel (%p364) target = $region72
        $region71: #{tpu_custom_call.1} parent=67 // pred_region
          %s367 = sand.u32 %s75, 1
          %s368 = scalar_lea.sflag [#allocation8], %s367
          %s369 = sand.u32 %s75, 1
          %s370 = smul.addr %s369, 8
          %s371 = scalar_lea.vmem [#allocation9], %s370
          %373 = dma.done %s368, 128
        $region72: #{tpu_custom_call.1} parent=67 // pred_fallthru
          _
      $region68: #{tpu_custom_call.1} parent=5 // pred_fallthru
        _
    $region6: #{tpu_custom_call.1} parent=1 // loop_footer
      %s25 = sadd.s32 1, %s21
    $region7: #{tpu_custom_call.1} parent=1 // loop_footer_branch
      %20 = sbr.rel target = $region3
    $region8: #{tpu_custom_call.1} parent=1 // loop_exit
      _
    %374 = vsyncpa [#allocation7], 1
    %s375 = scalar_lea.sflag [#allocation7], 1
    %376 = vsyncpa %s375, 1
    %377 = vsyncpa [#allocation8], 1
    %s378 = scalar_lea.sflag [#allocation8], 1
    %379 = vsyncpa %s378, 1
  %380 = vsyncmov [#allocation3]
  %s381 = vpop.sfrf %380
  %p382 = scmp.eq.s32.totalorder %s381, 0
  %p383 = pneg %p382
  %385 = shalt.err (%p383)
  %s386 = scalar_lea.sflag [#allocation3], 1
  %387 = vsyncmov %s386
  %s388 = vpop.sfrf %387
  %p389 = scmp.eq.s32.totalorder %s388, 0
  %p390 = pneg %p389
  %392 = shalt.err (%p390)
  %s393 = scalar_lea.sflag [#allocation3], 2
  %394 = vsyncmov %s393
  %s395 = vpop.sfrf %394
  %p396 = scmp.eq.s32.totalorder %s395, 0
  %p397 = pneg %p396
  %399 = shalt.err (%p397)
  %s400 = scalar_lea.sflag [#allocation3], 3
  %401 = vsyncmov %s400
  %s402 = vpop.sfrf %401
  %p403 = scmp.eq.s32.totalorder %s402, 0
  %p404 = pneg %p403
  %406 = shalt.err (%p404)
  %s407 = scalar_lea.sflag [#allocation3], 4
  %408 = vsyncmov %s407
  %s409 = vpop.sfrf %408
  %p410 = scmp.eq.s32.totalorder %s409, 0
  %p411 = pneg %p410
  %413 = shalt.err (%p411)
  %s414 = scalar_lea.sflag [#allocation3], 5
  %415 = vsyncmov %s414
  %s416 = vpop.sfrf %415
  %p417 = scmp.eq.s32.totalorder %s416, 0
  %p418 = pneg %p417
  %420 = shalt.err (%p418)
  %s421 = scalar_lea.sflag [#allocation3], 6
  %422 = vsyncmov %s421
  %s423 = vpop.sfrf %422
  %p424 = scmp.eq.s32.totalorder %s423, 0
  %p425 = pneg %p424
  %427 = shalt.err (%p425)
  %s428 = scalar_lea.sflag [#allocation3], 7
  %429 = vsyncmov %s428
  %s430 = vpop.sfrf %429
  %p431 = scmp.eq.s32.totalorder %s430, 0
  %p432 = pneg %p431
  %434 = shalt.err (%p432)

</llo_original>
